<compile_context>
chip_gen: v7x
topology: tpu7x:2x2x1
jax: 0.10.0
libtpu: 0.0.40
codegen_flags: <defaults>
</compile_context>

<pallas_src>
import functools
import math

import jax
import jax.numpy as jnp
from jax.experimental import pallas as pl
from jax.experimental.pallas import tpu as pltpu

_LANES = 128
_MAX_TM = 512  # rows per tile (512x128 f32 = 256 KiB per input tile)


def _qvfl_kernel(pred_ref, tgt_ref, out_ref, acc_ref, *, alpha, beta, gamma,
                 pos_thr):
    i = pl.program_id(0)
    nsteps = pl.num_programs(0)

    @pl.when(i == 0)
    def _():
        acc_ref[...] = jnp.zeros_like(acc_ref)

    pred = pred_ref[...]
    tgt = tgt_ref[...]

    # One exp per element; derive both sigmoid and the stable BCE log term.
    e = jnp.exp(-jnp.abs(pred))                    # exp(-|x|), in (0, 1]
    inv_denom = 1.0 / (1.0 + e)
    sig = jnp.where(pred >= 0.0, 1.0, e) * inv_denom   # sigmoid(pred)

    pos = (tgt > pos_thr).astype(jnp.float32)      # pos_flag
    neg = 1.0 - pos                                # neg_flag

    # Specialize the (default) integer powers at trace time -> pure VPU muls.
    if beta == 2.0:
        target_p = tgt * tgt
    else:
        target_p = jnp.power(tgt, beta)
    if gamma == 2.0:
        mod = sig * sig                            # sigmoid >= 0, abs redundant
    else:
        mod = jnp.power(sig, gamma)

    # iou_weighted=True branch:
    focal_weight = target_p * pos + alpha * mod * neg

    # binary_cross_entropy_with_logits(pred, target * pos_flag, 'none'),
    # stable form: max(x,0) - x*z + log1p(exp(-|x|))
    z = tgt * pos
    bce = jnp.maximum(pred, 0.0) - pred * z + jnp.log1p(e)

    loss = bce * focal_weight                      # (tm, 128)

    # Per-tile partial sum down to vreg shape only (VPU adds, no XLU).
    tm = loss.shape[0]
    acc_ref[...] += loss.reshape(tm // 8, 8, _LANES).sum(axis=0)

    @pl.when(i == nsteps - 1)
    def _():
        out_ref[0, 0] = jnp.sum(acc_ref[...])      # single XLU reduce at the end


def qvarifocal_loss_pallas(pred, target, thr=None, *, alpha=1.0 / 3.0, beta=2.0,
                           gamma=2.0, loss_weight=1.0):
    """QVarifocalLoss.forward with defaults:
    use_sigmoid=True, iou_weighted=True, reduction='mean',
    weight=None, avg_factor=None, reduction_override=None.

    `thr` is accepted (as in the PyTorch signature) but unused — the reference
    code hard-codes the positive threshold 0.15.
    """
    assert pred.shape == target.shape
    n_elem = int(math.prod(pred.shape))

    # ---- lane-dense (rows, 128) layout with padding ----
    rows = pl.cdiv(n_elem, _LANES)
    if rows >= _MAX_TM:
        tm = _MAX_TM
    else:
        tm = ((rows + 7) // 8) * 8                 # 8-row (sublane) aligned
    rows_padded = pl.cdiv(rows, tm) * tm
    pad = rows_padded * _LANES - n_elem

    pred_flat = pred.reshape(-1).astype(jnp.float32)
    tgt_flat = target.reshape(-1).astype(jnp.float32)
    if pad:
        # pred=-100, target=0 -> sigmoid~0, bce~0 -> zero loss contribution.
        pred_flat = jnp.pad(pred_flat, (0, pad), constant_values=-100.0)
        tgt_flat = jnp.pad(tgt_flat, (0, pad), constant_values=0.0)
    pred2d = pred_flat.reshape(rows_padded, _LANES)
    tgt2d = tgt_flat.reshape(rows_padded, _LANES)

    grid_n = rows_padded // tm

    kernel = functools.partial(
        _qvfl_kernel, alpha=float(alpha), beta=float(beta), gamma=float(gamma),
        pos_thr=0.15)

    total = pl.pallas_call(
        kernel,
        out_shape=jax.ShapeDtypeStruct((1, 1), jnp.float32),
        grid=(grid_n,),
        in_specs=[
            pl.BlockSpec((tm, _LANES), lambda i: (i, 0)),
            pl.BlockSpec((tm, _LANES), lambda i: (i, 0)),
        ],
        out_specs=pl.BlockSpec(memory_space=pltpu.SMEM),
        scratch_shapes=[pltpu.VMEM((8, _LANES), jnp.float32)],
        compiler_params=pltpu.CompilerParams(
            dimension_semantics=("arbitrary",)),
    )(pred2d, tgt2d)

    # reduction='mean', weight=None, avg_factor=None  ->  loss.mean()
    return jnp.float32(loss_weight) * total[0, 0] / jnp.float32(n_elem)


def _qvarifocal_loss_ref(pred, target, *, alpha=1.0 / 3.0, beta=2.0, gamma=2.0,
                         loss_weight=1.0):
    pred = pred.astype(jnp.float32)
    target = target.astype(jnp.float32)
    pred_sigmoid = jax.nn.sigmoid(pred)
    target_p = jnp.power(target, beta)
    pos = (target > 0.15).astype(jnp.float32)
    neg = 1.0 - pos
    focal_weight = (target_p * pos
                    + alpha * jnp.power(jnp.abs(pred_sigmoid), gamma) * neg)
    z = target * pos
    bce = jnp.maximum(pred, 0.0) - pred * z + jnp.log1p(jnp.exp(-jnp.abs(pred)))
    return loss_weight * jnp.mean(bce * focal_weight)


if __name__ == "__main__":
    key = jax.random.PRNGKey(0)
    k1, k2 = jax.random.split(key)

    N, C = 16, 32  # (num_preds, num_classes) — small test shape
    pred = jax.random.normal(k1, (N, C), dtype=jnp.float32) * 2.0
    # iou-aware classification score targets in [0, 1], mostly sparse positives
    target = jnp.clip(
        jax.random.uniform(k2, (N, C), dtype=jnp.float32) * 1.4 - 0.4, 0.0, 1.0)
    thr = 0.15  # accepted but unused, as in the reference implementation

    out = qvarifocal_loss_pallas(pred, target, thr)
    out = jax.block_until_ready(out)

    ref = _qvarifocal_loss_ref(pred, target)
    assert jnp.allclose(out, ref, rtol=1e-4, atol=1e-6), (out, ref)

    # Also exercise a larger, non-multiple-of-tile shape to cover padding path.
    N2, C2 = 1000, 80
    k3, k4 = jax.random.split(k1)
    pred2 = jax.random.normal(k3, (N2, C2), dtype=jnp.float32) * 2.0
    target2 = jnp.clip(
        jax.random.uniform(k4, (N2, C2), dtype=jnp.float32) * 1.4 - 0.4, 0.0, 1.0)
    out2 = jax.block_until_ready(qvarifocal_loss_pallas(pred2, target2, thr))
    ref2 = _qvarifocal_loss_ref(pred2, target2)
    assert jnp.allclose(out2, ref2, rtol=1e-4, atol=1e-6), (out2, ref2)

    print("KERNEL_OK")
</pallas_src>

<mosaic_0001>
module attributes {stable_mosaic.version = 11 : i64} {
  func.func @_qvfl_kernel(%arg0: i32, %arg1: memref<8x128xf32, #tpu.memory_space<vmem>>, %arg2: memref<8x128xf32, #tpu.memory_space<vmem>>, %arg3: memref<1x1xf32, #tpu.memory_space<smem>>, %arg4: memref<8x128xf32, #tpu.memory_space<vmem>>) attributes {dimension_semantics = [#tpu.dimension_semantics<arbitrary>], iteration_bounds = array<i64: 1>, scalar_prefetch = 0 : i64, scratch_operands = 1 : i64, tpu.core_type = #tpu.core_type<tc>, window_params = [{transform_indices = @transform_0, window_bounds = array<i64: 8, 128>}, {transform_indices = @transform_1, window_bounds = array<i64: 8, 128>}, {transform_indices = @transform_2, window_bounds = array<i64: 1, 1>}]} {
    %c0_i32 = arith.constant 0 : i32
    %0 = arith.cmpi eq, %arg0, %c0_i32 : i32
    %1 = arith.extui %0 : i1 to i32
    %c0_i32_0 = arith.constant 0 : i32
    %2 = arith.cmpi ne, %1, %c0_i32_0 : i32
    scf.if %2 {
      %cst_19 = arith.constant 0.000000e+00 : f32
      %47 = vector.broadcast %cst_19 : f32 to vector<8x128xf32>
      %c0_20 = arith.constant 0 : index
      %c0_21 = arith.constant 0 : index
      %48 = vector.load %arg4[%c0_20, %c0_21] : memref<8x128xf32, #tpu.memory_space<vmem>>, vector<8x128xf32>
      tpu.vector_store %arg4[%c0_20, %c0_21], %47 {strides = array<i32>} : memref<8x128xf32, #tpu.memory_space<vmem>>, vector<8x128xf32>,
    } else {
    }
    %c0 = arith.constant 0 : index
    %c0_1 = arith.constant 0 : index
    %3 = vector.load %arg1[%c0, %c0_1] : memref<8x128xf32, #tpu.memory_space<vmem>>, vector<8x128xf32>
    %c0_2 = arith.constant 0 : index
    %c0_3 = arith.constant 0 : index
    %4 = vector.load %arg2[%c0_2, %c0_3] : memref<8x128xf32, #tpu.memory_space<vmem>>, vector<8x128xf32>
    %5 = math.absf %3 : vector<8x128xf32>
    %cst = arith.constant 0.000000e+00 : f32
    %6 = vector.broadcast %cst : f32 to vector<8x128xf32>
    %7 = arith.subf %6, %5 : vector<8x128xf32>
    %8 = math.exp %7 : vector<8x128xf32>
    %cst_4 = arith.constant 1.000000e+00 : f32
    %9 = vector.broadcast %cst_4 : f32 to vector<8x128xf32>
    %10 = arith.addf %9, %8 : vector<8x128xf32>
    %cst_5 = arith.constant 1.000000e+00 : f32
    %11 = vector.broadcast %cst_5 : f32 to vector<8x128xf32>
    %12 = arith.divf %11, %10 : vector<8x128xf32>
    %cst_6 = arith.constant 0.000000e+00 : f32
    %13 = vector.broadcast %cst_6 : f32 to vector<8x128xf32>
    %14 = arith.cmpf oge, %3, %13 : vector<8x128xf32>
    %cst_7 = arith.constant 1.000000e+00 : f32
    %15 = vector.broadcast %cst_7 : f32 to vector<8x128xf32>
    %16 = arith.select %14, %15, %8 : vector<8x128xi1>, vector<8x128xf32>
    %17 = arith.mulf %16, %12 : vector<8x128xf32>
    %cst_8 = arith.constant 1.500000e-01 : f32
    %18 = vector.broadcast %cst_8 : f32 to vector<8x128xf32>
    %19 = arith.cmpf ogt, %4, %18 : vector<8x128xf32>
    %20 = arith.extui %19 : vector<8x128xi1> to vector<8x128xi32>
    %21 = arith.sitofp %20 : vector<8x128xi32> to vector<8x128xf32>
    %cst_9 = arith.constant 1.000000e+00 : f32
    %22 = vector.broadcast %cst_9 : f32 to vector<8x128xf32>
    %23 = arith.subf %22, %21 : vector<8x128xf32>
    %24 = arith.mulf %4, %4 : vector<8x128xf32>
    %25 = arith.mulf %17, %17 : vector<8x128xf32>
    %26 = arith.mulf %24, %21 : vector<8x128xf32>
    %cst_10 = arith.constant 0.333333343 : f32
    %27 = vector.broadcast %cst_10 : f32 to vector<8x128xf32>
    %28 = arith.mulf %27, %25 : vector<8x128xf32>
    %29 = arith.mulf %28, %23 : vector<8x128xf32>
    %30 = arith.addf %26, %29 : vector<8x128xf32>
    %31 = arith.mulf %4, %21 : vector<8x128xf32>
    %cst_11 = arith.constant 0.000000e+00 : f32
    %32 = vector.broadcast %cst_11 : f32 to vector<8x128xf32>
    %33 = arith.maximumf %3, %32 : vector<8x128xf32>
    %34 = arith.mulf %3, %31 : vector<8x128xf32>
    %35 = arith.subf %33, %34 : vector<8x128xf32>
    %36 = math.log1p %8 : vector<8x128xf32>
    %37 = arith.addf %35, %36 : vector<8x128xf32>
    %38 = arith.mulf %37, %30 : vector<8x128xf32>
    %c0_12 = arith.constant 0 : index
    %c0_13 = arith.constant 0 : index
    %39 = vector.load %arg4[%c0_12, %c0_13] : memref<8x128xf32, #tpu.memory_space<vmem>>, vector<8x128xf32>
    %40 = vector.shape_cast %38 : vector<8x128xf32> to vector<1x8x128xf32>
    %cst_14 = arith.constant dense<0.000000e+00> : vector<8x128xf32>
    %41 = vector.multi_reduction <add>, %40, %cst_14 [0] : vector<1x8x128xf32> to vector<8x128xf32>
    %42 = arith.addf %39, %41 : vector<8x128xf32>
    %c0_15 = arith.constant 0 : index
    %c0_16 = arith.constant 0 : index
    %43 = vector.load %arg4[%c0_15, %c0_16] : memref<8x128xf32, #tpu.memory_space<vmem>>, vector<8x128xf32>
    tpu.vector_store %arg4[%c0_15, %c0_16], %42 {strides = array<i32>} : memref<8x128xf32, #tpu.memory_space<vmem>>, vector<8x128xf32>,
    %c0_i32_17 = arith.constant 0 : i32
    %44 = arith.cmpi eq, %arg0, %c0_i32_17 : i32
    %45 = arith.extui %44 : i1 to i32
    %c0_i32_18 = arith.constant 0 : i32
    %46 = arith.cmpi ne, %45, %c0_i32_18 : i32
    scf.if %46 {
      %c0_19 = arith.constant 0 : index
      %c0_20 = arith.constant 0 : index
      %47 = vector.load %arg4[%c0_19, %c0_20] : memref<8x128xf32, #tpu.memory_space<vmem>>, vector<8x128xf32>
      %48 = vector.shape_cast %47 : vector<8x128xf32> to vector<1x8x128xf32>
      %cst_21 = arith.constant dense<0.000000e+00> : vector<1xf32>
      %49 = vector.multi_reduction <add>, %48, %cst_21 [1, 2] : vector<1x8x128xf32> to vector<1xf32>
      %50 = vector.shape_cast %49 : vector<1xf32> to vector<1x1x1xf32>
      %51 = vector.extract %50[0, 0, 0] : f32 from vector<1x1x1xf32>
      %c0_22 = arith.constant 0 : index
      %c0_23 = arith.constant 0 : index
      %52 = memref.load %arg3[%c0_22, %c0_23] : memref<1x1xf32, #tpu.memory_space<smem>>
      memref.store %51, %arg3[%c0_22, %c0_23] : memref<1x1xf32, #tpu.memory_space<smem>>
    } else {
    }
    return
  }
  func.func @transform_0(%arg0: i32) -> (i32, i32) {
    %c0_i32 = arith.constant 0 : i32
    %c0_i32_0 = arith.constant 0 : i32
    return %arg0, %c0_i32 : i32, i32
  }
  func.func @transform_1(%arg0: i32) -> (i32, i32) {
    %c0_i32 = arith.constant 0 : i32
    %c0_i32_0 = arith.constant 0 : i32
    return %arg0, %c0_i32 : i32, i32
  }
  func.func @transform_2(%arg0: i32) -> (i32, i32) {
    %c0_i32 = arith.constant 0 : i32
    %c0_i32_0 = arith.constant 0 : i32
    %c0_i32_1 = arith.constant 0 : i32
    return %c0_i32, %c0_i32_0 : i32, i32
  }
}

</mosaic_0001>

<llo_original>
// kernel: tpu_custom_call.1
$region0: #{tpu_custom_call.1}
  #allocation0 [shape = 'u32[]', space=smem, size = 0x4, offset = 0x4, fixed_abs, tag = 'smem constant byte address 0x4 - core index']
  #allocation1 [shape = 'u32[144,128]{1,0:T(1,128)}', space=vmem, size = 0x12000, scoped, tag = 'internal scratch']
  #allocation2 [shape = 'f32[8,128]{1,0:T(8,128)}', space=vmem, size = 0x1000, scoped, tag = 'scratch operand']
  %s0 = inlined_call_operand.hbm [shape: f32[8,128], index: 0, kind: input, shape index: {}]
  %s1 = inlined_call_operand.hbm [shape: f32[8,128], index: 1, kind: input, shape index: {}]
  %s2 = inlined_call_operand.hbm [shape: f32[1,1], index: 2, kind: output, shape index: {}]
  %s3 = sld [smem:[#allocation0]]
  $region34: #{tpu_custom_call.1} parent=0
    _
  %s5 = ssub.s32 1, %s3
  %s6 = scalar_select 0, %s5, %s3
  $region1: #{tpu_custom_call.1} parent=0
    #allocation3 [shape = 'u8[4096]{0}', space=vmem, size = 0x1000, scoped, tag = 'input window, operand 0, single buffered']
    #allocation4 [shape = 's32[1]{0}', space=sflag, size = 0x4, scoped, tag = 'scoped memory for tpu_custom_call.1']
    #allocation5 [shape = 's32[1]{0}', space=sflag, size = 0x4, scoped, tag = 'scoped memory for tpu_custom_call.1']
    #allocation6 [shape = 'u8[4096]{0}', space=vmem, size = 0x1000, scoped, tag = 'input window, operand 1, single buffered']
    #allocation7 [shape = 's32[1]{0}', space=sflag, size = 0x4, scoped, tag = 'scoped memory for tpu_custom_call.1']
    #allocation8 [shape = 'u8[512]{0}', space=smem, size = 0x200, scoped, tag = 'output window, operand 0, single buffered']
    %7 = vsyncpa [#allocation4], 0
    %8 = vsyncpa [#allocation7], 0
    %9 = vsyncpa [#allocation5], 0
    // Predicated region
    $region2: #{tpu_custom_call.1} parent=1 // pred_check
      _
    $region3: #{tpu_custom_call.1} parent=1 // pred_check_branch
      %11 = sbr.rel (0) target = $region5
    $region4: #{tpu_custom_call.1} parent=1 // pred_region
      %s13 = ssub.s32 128, 128
      %14 = vsyncadd [#allocation4], %s13
      %s16 = sshll.u32 [#allocation3], 4
      %s17 = int_to_ptr.vmem [resolvable:$true] %s16
      %19 = dma.hbm_to_vmem [thread:$0]  %s0, 128, %s17, [#allocation4]
    $region5: #{tpu_custom_call.1} parent=1 // pred_fallthru
      _
    // Predicated region
    $region6: #{tpu_custom_call.1} parent=1 // pred_check
      _
    $region7: #{tpu_custom_call.1} parent=1 // pred_check_branch
      %21 = sbr.rel (0) target = $region9
    $region8: #{tpu_custom_call.1} parent=1 // pred_region
      %s23 = ssub.s32 128, 128
      %24 = vsyncadd [#allocation7], %s23
      %s26 = sshll.u32 [#allocation6], 4
      %s27 = int_to_ptr.vmem [resolvable:$true] %s26
      %29 = dma.hbm_to_vmem [thread:$0]  %s1, 128, %s27, [#allocation7]
    $region9: #{tpu_custom_call.1} parent=1 // pred_fallthru
      _
    // Predicated region
    $region10: #{tpu_custom_call.1} parent=1 // pred_check
      _
    $region11: #{tpu_custom_call.1} parent=1 // pred_check_branch
      %31 = sbr.rel (0) target = $region13
    $region12: #{tpu_custom_call.1} parent=1 // pred_region
      %32 = dma.done [#allocation4], 128
    $region13: #{tpu_custom_call.1} parent=1 // pred_fallthru
      _
    // Predicated region
    $region14: #{tpu_custom_call.1} parent=1 // pred_check
      _
    $region15: #{tpu_custom_call.1} parent=1 // pred_check_branch
      %34 = sbr.rel (0) target = $region17
    $region16: #{tpu_custom_call.1} parent=1 // pred_region
      %35 = dma.done [#allocation7], 128
    $region17: #{tpu_custom_call.1} parent=1 // pred_fallthru
      _
    %p36 = scmp.eq.s32.totalorder 0, 0
    // Predicated region
    $region18: #{tpu_custom_call.1} parent=1 // pred_check
      %p37 = pneg %p36
    $region19: #{tpu_custom_call.1} parent=1 // pred_check_branch
      %39 = sbr.rel (%p37) target = $region21
    $region20: #{tpu_custom_call.1} parent=1 // pred_region
      %40 = vst [vmem:[#allocation2] sm:$0xff] 0.0
    $region21: #{tpu_custom_call.1} parent=1 // pred_fallthru
      _
    %v41 = vld [vmem:[#allocation3] sm:$0xff]
    %v42 = vld [vmem:[#allocation6] sm:$0xff]
    %v43 = vand.u32 2147483647, %v41
    %v44 = vsub.f32 0.0, %v43
    %v45 = vmul.f32 %v44, 1.442695
    %v46 = vpow.pop %v45
    %v47 = vadd.f32 %v46, 1.0
    %v48 = vrcp.pop %v47
    %v49 = vmul.f32 1.0, %v48
    %vm50 = vcmp.ge.f32.partialorder %v41, 0.0
    %v51 = vsel %vm50, 1.0, %v46
    %v52 = vmul.f32 %v51, %v49
    %vm53 = vcmp.gt.f32.partialorder %v42, 0.15
    %v54 = vsel %vm53, 1, 0
    %v55 = vcvt.s32.f32 %v54
    %v56 = vsub.f32 1.0, %v55
    %v57 = vmul.f32 %v42, %v42
    %v58 = vmul.f32 %v52, %v52
    %v59 = vmul.f32 %v57, %v55
    %v60 = vmul.f32 %v58, 0.33333334
    %v61 = vmul.f32 %v60, %v56
    %v62 = vadd.f32 %v59, %v61
    %v63 = vmul.f32 %v42, %v55
    %v64 = vmax.f32 %v41, 0.0
    %v65 = vmul.f32 %v41, %v63
    %v66 = vsub.f32 %v64, %v65
    %v67 = vadd.f32 %v46, 1.0
    %v68 = vlog2.pop %v67
    %v69 = vmul.f32 %v68, 0.6931472
    %v70 = vmul.f32 -0.5, %v46
    %v71 = vadd.f32 %v70, 1.0
    %v72 = vmul.f32 %v71, %v46
    %v73 = vand.u32 2147483647, %v46
    %vm74 = vcmp.lt.f32.partialorder %v73, 0.0004427343
    %v75 = vsel %vm74, %v72, %v69
    %v76 = vadd.f32 %v66, %v75
    %v77 = vmul.f32 %v76, %v62
    %v78 = vld [vmem:[#allocation2] sm:$0xff]
    %v79 = vadd.f32 %v77, 0.0
    %v80 = vadd.f32 %v78, %v79
    %81 = vst [vmem:[#allocation2] sm:$0xff] %v80
    // Predicated region
    $region22: #{tpu_custom_call.1} parent=1 // pred_check
      %p82 = pneg %p36
    $region23: #{tpu_custom_call.1} parent=1 // pred_check_branch
      %84 = sbr.rel (%p82) target = $region25
    $region24: #{tpu_custom_call.1} parent=1 // pred_region
      %v85 = vld [vmem:[#allocation2] sm:$0xff]
      %86 = vadd.xlane.f32.xlu0 %v85
      %v87 = vpop.xlane.xlu0 %86
      %v88 = vrot.slane %v87, 4
      %v89 = vadd.f32 %v87, %v88
      %v90 = vrot.slane %v89, 2
      %v91 = vadd.f32 %v89, %v90
      %v92 = vrot.slane %v91, 1
      %v93 = vadd.f32 %v91, %v92
      %s94 = vtos %v93
      %s95 = scalar_lea.smem [#allocation8], 0
      %96 = sst [smem:[%s95]] %s94
    $region25: #{tpu_custom_call.1} parent=1 // pred_fallthru
      _
    // Predicated region
    $region26: #{tpu_custom_call.1} parent=1 // pred_check
      _
    $region27: #{tpu_custom_call.1} parent=1 // pred_check_branch
      %98 = sbr.rel (0) target = $region29
    $region28: #{tpu_custom_call.1} parent=1 // pred_region
      %s100 = ssub.s32 16, 16
      %101 = vsyncadd [#allocation5], %s100
      %104 = dma.smem_to_hbm [#allocation8], 16, %s2, [#allocation5]
    $region29: #{tpu_custom_call.1} parent=1 // pred_fallthru
      _
    // Predicated region
    $region30: #{tpu_custom_call.1} parent=1 // pred_check
      _
    $region31: #{tpu_custom_call.1} parent=1 // pred_check_branch
      %106 = sbr.rel (0) target = $region33
    $region32: #{tpu_custom_call.1} parent=1 // pred_region
      %107 = dma.done [#allocation5], 16
    $region33: #{tpu_custom_call.1} parent=1 // pred_fallthru
      _
    %108 = sfence
    %109 = vsyncpa [#allocation4], 1
    %110 = vsyncpa [#allocation7], 1
    %111 = vsyncpa [#allocation5], 1

</llo_original>
